<compile_context>
chip_gen: v6e
topology: v6e:2x2x1
jax: 0.10.0
libtpu: 0.0.40
codegen_flags: <defaults>
</compile_context>

<pallas_src>
import jax
import jax.numpy as jnp
from jax.experimental import pallas as pl
from jax.experimental.pallas import tpu as pltpu


def _round_up(x, m):
    return ((x + m - 1) // m) * m


def _make_hce_kernel(use_ls_scratch):
    """Build the kernel body.

    Grid = (n_tiles, n_levels); the level axis is innermost, so the logits block
    (index (ti, 0), constant across the level axis) stays resident in VMEM for all
    levels of an N-tile.

    Refs (in order):
      hasw_ref : SMEM (L,)        int32     1 if this level has a per-class weight
      x_ref    : VMEM (TN, C)     f32/bf16  logits tile
      sg_ref   : VMEM (TN, 1)     int32     sample group id at this level (-1 = pad row)
      cg_ref   : VMEM (L, 1, C)   int32     class group id per level (grid-resident)
      w_ref    : VMEM (L, 1, C)   f32       per-class weight per level (grid-resident)
      out_ref  : VMEM (1, 128)    f32       this (tile, level)'s -sum(LS*T[*W]) partial
      ls_ref   : VMEM (TN, C)     f32       scratch (only when the input is not f32)
    """

    def kernel(hasw_ref, x_ref, sg_ref, cg_ref, w_ref, out_ref, *scratch):
        ls_ref = scratch[0] if use_ls_scratch else x_ref
        li = pl.program_id(1)

        # First level of every N-tile: log-softmax once, kept in VMEM for all levels.
        @pl.when(li == 0)
        def _():
            x = x_ref[...].astype(jnp.float32)
            m = jnp.max(x, axis=1, keepdims=True)
            xs = x - m
            ls = xs - jnp.log(jnp.sum(jnp.exp(xs), axis=1, keepdims=True))
            ls_ref[...] = ls.astype(ls_ref.dtype)

        ls = ls_ref[...]
        # Multi-hot target rebuilt from tiny group-id tables; padded rows (sg == -1)
        # match no class, and jnp.where is a select, so garbage rows of a ragged last
        # tile contribute exactly zero.
        mask = sg_ref[...] == cg_ref[li]                        # (TN, C) bool
        has_w = hasw_ref[li]

        @pl.when(has_w != 0)
        def _():
            num = -jnp.sum(jnp.where(mask, ls * w_ref[li], 0.0))
            out_ref[...] = jnp.full((1, 128), num, dtype=jnp.float32)

        @pl.when(has_w == 0)
        def _():
            num = -jnp.sum(jnp.where(mask, ls, 0.0))
            out_ref[...] = jnp.full((1, 128), num, dtype=jnp.float32)

    return kernel


def _vmem_capacity_bytes():
    try:
        cap = getattr(pltpu.get_tpu_info(), "vmem_capacity_bytes", None)
        if cap:
            return int(cap)
    except Exception:
        pass
    return 64 * 1024 * 1024            # v7x-safe fallback


def _pick_tile_n(n, c, x_itemsize, use_ls_scratch, num_levels, cap):
    # Biggest N tile that fits the generation-aware scoped-VMEM budget
    # (~48 MiB on v5e/v6e's 128 MiB VMEM, ~28 MiB on v7x's 64 MiB).
    budget = min(int(0.45 * cap), 48 * 1024 * 1024)
    c_lanes = _round_up(c, 128)
    resident = 4 * num_levels * 8 * c_lanes * 4 + (1 << 16)     # cg + w tables + misc
    tile = 1024
    while tile > 8:
        foot = 2 * tile * c_lanes * x_itemsize                  # double-buffered logits
        if use_ls_scratch:
            foot += tile * c_lanes * 4                          # f32 log-softmax scratch
        foot += 4 * tile * 4                                    # sample-group buffers
        if foot + resident <= budget:
            break
        tile //= 2
    tile = max(8, min(tile, _round_up(n, 8)))
    # v7x has 2 TensorCores sharing the parallel N-tile axis: keep >= 2 tiles when a
    # single tile would idle one core.
    if n > 512 and -(-n // tile) < 2:
        tile = max(8, _round_up(-(-n // 2), 8))
    return tile


def hierarchical_ce_loss(logits, labels, class_group, class_weight,
                         coeffs, has_weight, *, tile_n=None):
    """logits: (N, C) f32 or bf16; labels: (N,) int; class_group: (L, C) int group id of
    every class at every level (level 0 = arange(C) -> plain one-hot CE);
    class_weight: (L, C) f32 (rows of unweighted levels are ignored);
    coeffs: (L,); has_weight: (L,) 0/1."""
    n, c = logits.shape
    num_levels, cg_c = class_group.shape
    assert cg_c == c and class_weight.shape == (num_levels, c)

    coeffs = jnp.asarray(coeffs, jnp.float32)
    has_weight = jnp.asarray(has_weight, jnp.int32)
    class_group = jnp.asarray(class_group, jnp.int32)
    class_weight = jnp.asarray(class_weight, jnp.float32)
    labels = jnp.asarray(labels, jnp.int32)

    # Stream logits in their native dtype (bf16 halves the dominant HBM stream); all
    # in-kernel math is f32. f32 inputs reuse their own VMEM buffer for the
    # log-softmax; narrow dtypes get a dedicated f32 scratch.
    use_ls_scratch = logits.dtype != jnp.float32
    x_itemsize = jnp.dtype(logits.dtype).itemsize

    cap = _vmem_capacity_bytes()
    if tile_n is None:
        tile_n = _pick_tile_n(n, c, x_itemsize, use_ls_scratch, num_levels, cap)
    tile_n = max(8, (int(tile_n) // 8) * 8)
    tile_n = min(tile_n, _round_up(n, 8))
    n_tiles = -(-n // tile_n)
    n_pad = n_tiles * tile_n

    # Per-sample group id at every level: tiny (L, N) gather in XLA. Rows of the ragged
    # last tile get group -1 so they match no class in-kernel.
    sample_group = jnp.take(class_group, labels, axis=1)                      # (L, N)
    sample_group = jnp.pad(sample_group, ((0, 0), (0, n_pad - n)),
                           constant_values=-1).reshape(num_levels, n_pad, 1)

    cg3 = class_group.reshape(num_levels, 1, c)
    w3 = class_weight.reshape(num_levels, 1, c)

    # Weighted denominators sum_n sum_c T*W precomputed outside the kernel:
    # gws[l, c] = total weight of class c's group; den_w[l] = sum_n gws[l, label_n].
    same_group = class_group[:, :, None] == class_group[:, None, :]          # (L, C, C)
    gws = jnp.einsum('lcd,ld->lc', same_group.astype(jnp.float32), class_weight)
    den_w = jnp.sum(jnp.take(gws, labels, axis=1), axis=1)                   # (L,)

    # Scoped VMEM: double-buffered logits tile (+ LS scratch for narrow dtypes) +
    # resident class tables, with headroom; never below the 32 MiB default.
    c_lanes = _round_up(c, 128)
    foot = 2 * tile_n * c_lanes * x_itemsize
    if use_ls_scratch:
        foot += tile_n * c_lanes * 4
    foot += 4 * num_levels * 8 * c_lanes * 4 + 4 * tile_n * 4
    vmem_limit = int(min(int(0.85 * cap), max(32 * 1024 * 1024, foot + (8 << 20))))

    scratch_shapes = ([pltpu.VMEM((tile_n, c), jnp.float32)]
                      if use_ls_scratch else [])

    partials = pl.pallas_call(
        _make_hce_kernel(use_ls_scratch),
        out_shape=jax.ShapeDtypeStruct((n_tiles, num_levels, 1, 128), jnp.float32),
        grid_spec=pltpu.PrefetchScalarGridSpec(
            num_scalar_prefetch=1,                        # has_weight -> SMEM
            grid=(n_tiles, num_levels),                   # level axis innermost
            in_specs=[
                # logits: one block per N-tile, constant across the level axis
                # (stays VMEM-resident; in-place log-softmax relies on this).
                pl.BlockSpec((tile_n, c), lambda ti, li, hw: (ti, 0)),
                # per-sample group ids for this (tile, level): tiny per-step DMA.
                pl.BlockSpec((None, tile_n, 1), lambda ti, li, hw: (li, ti, 0)),
                # per-class group ids / weights: full-extent, constant index ->
                # fetched once, resident for the whole grid.
                pl.BlockSpec((num_levels, 1, c), lambda ti, li, hw: (0, 0, 0)),
                pl.BlockSpec((num_levels, 1, c), lambda ti, li, hw: (0, 0, 0)),
            ],
            out_specs=pl.BlockSpec((None, None, 1, 128),
                                   lambda ti, li, hw: (ti, li, 0, 0)),
            scratch_shapes=scratch_shapes,
        ),
        compiler_params=pltpu.CompilerParams(
            dimension_semantics=("parallel", "arbitrary"),
            vmem_limit_bytes=vmem_limit),
    )(has_weight, logits, sample_group, cg3, w3)

    # Finalize: O(L) scalars. Weighted levels use the precomputed sum(T*W); unweighted
    # levels divide by the real batch size (mean over N).
    num = jnp.sum(partials[:, :, 0, 0], axis=0)           # (L,)
    den = jnp.where(has_weight != 0, den_w, jnp.float32(n))
    return jnp.sum(coeffs * (num / den))


# ----------------------- plain-JAX glue & reference -----------------------

def build_class_group_ids(num_classes, group_sizes):
    """Per-level class -> group-id table (mimics hierarchy_dict). Level 0 is the
    identity (plain one-hot CE); level i>0 groups classes in blocks of group_sizes[i-1]."""
    ids = [jnp.arange(num_classes, dtype=jnp.int32)]
    for gs in group_sizes:
        ids.append(jnp.arange(num_classes, dtype=jnp.int32) // gs)
    return jnp.stack(ids, axis=0)


def ref_loss(logits, labels, class_group, class_weight, coeffs, has_weight):
    """Pure-JAX reference mirroring the PyTorch hierarchicalCrossEntropyLoss forward."""
    ls = logits - jax.scipy.special.logsumexp(logits, axis=1, keepdims=True)
    total = jnp.float32(0.0)
    for i in range(len(coeffs)):
        cg = class_group[i]
        t = (cg[None, :] == cg[labels][:, None]).astype(jnp.float32)   # (N, C) multi-hot
        masked = ls * t
        if has_weight[i]:
            w = class_weight[i][None, :]
            lvl = -jnp.sum(masked * w) / jnp.sum(t * w)
        else:
            lvl = -jnp.mean(jnp.sum(masked, axis=1))
        total = total + coeffs[i] * lvl
    return total


if __name__ == "__main__":
    key = jax.random.PRNGKey(0)
    N, C = 200, 100                # small, deliberately ragged shapes
    coeffs = [1.0, 0.5, 0.25]      # level 0 (plain CE) + two hierarchy levels
    has_weight = [1, 0, 1]         # weighted, unweighted, weighted
    group_sizes = [10, 25]         # hierarchy: blocks of 10 and of 25 classes

    k_out, k_lbl, kw0, kw2 = jax.random.split(key, 4)
    logits = jax.random.normal(k_out, (N, C), jnp.float32)
    labels = jax.random.randint(k_lbl, (N,), 0, C)
    w0 = jax.random.uniform(kw0, (C,), jnp.float32, 0.5, 1.5)
    w2 = jax.random.uniform(kw2, (C,), jnp.float32, 0.5, 1.5)

    class_group = build_class_group_ids(C, group_sizes)                    # (L, C) int32
    class_weight = jnp.stack([w0, jnp.ones((C,), jnp.float32), w2], axis=0)

    ref = ref_loss(logits, labels, class_group, class_weight, coeffs, has_weight)

    # 1) auto tile, f32 logits (in-place log-softmax path, single N tile).
    loss_auto = jax.block_until_ready(hierarchical_ce_loss(
        logits, labels, class_group, class_weight, coeffs, has_weight))
    assert jnp.allclose(loss_auto, ref, rtol=1e-5, atol=1e-4), (loss_auto, ref)

    # 2) explicit smaller tile -> multiple N tiles + ragged last tile (masking path).
    loss_tiled = jax.block_until_ready(hierarchical_ce_loss(
        logits, labels, class_group, class_weight, coeffs, has_weight, tile_n=64))
    assert jnp.allclose(loss_tiled, ref, rtol=1e-5, atol=1e-4), (loss_tiled, ref)

    # 3) bf16 logits stream (f32 LS scratch path); compare against the reference
    #    evaluated on the same bf16-rounded logits.
    logits_bf16 = logits.astype(jnp.bfloat16)
    ref_bf16 = ref_loss(logits_bf16.astype(jnp.float32), labels, class_group,
                        class_weight, coeffs, has_weight)
    loss_bf16 = jax.block_until_ready(hierarchical_ce_loss(
        logits_bf16, labels, class_group, class_weight, coeffs, has_weight, tile_n=64))
    assert jnp.allclose(loss_bf16, ref_bf16, rtol=1e-4, atol=1e-4), (loss_bf16, ref_bf16)

    print("KERNEL_OK")
</pallas_src>

<mosaic_0001>
module attributes {stable_mosaic.version = 11 : i64} {
  func.func @kernel(%arg0: i32, %arg1: i32, %arg2: memref<3xi32, #tpu.memory_space<smem>>, %arg3: memref<200x100xf32, #tpu.memory_space<vmem>>, %arg4: memref<1x200x1xi32, #tpu.memory_space<vmem>>, %arg5: memref<3x1x100xi32, #tpu.memory_space<vmem>>, %arg6: memref<3x1x100xf32, #tpu.memory_space<vmem>>, %arg7: memref<1x1x1x128xf32, #tpu.memory_space<vmem>>) attributes {dimension_semantics = [#tpu.dimension_semantics<parallel>, #tpu.dimension_semantics<arbitrary>], iteration_bounds = array<i64: 1, 3>, scalar_prefetch = 1 : i64, scratch_operands = 0 : i64, tpu.core_type = #tpu.core_type<tc>, window_params = [{transform_indices = @transform_0, window_bounds = array<i64: 200, 100>}, {transform_indices = @transform_1, window_bounds = array<i64: 1, 200, 1>}, {pipeline_mode = #tpu.pipeline_mode<synchronous>, transform_indices = @transform_2, window_bounds = array<i64: 3, 1, 100>}, {pipeline_mode = #tpu.pipeline_mode<synchronous>, transform_indices = @transform_3, window_bounds = array<i64: 3, 1, 100>}, {transform_indices = @transform_4, window_bounds = array<i64: 1, 1, 1, 128>}]} {
    %c0_i32 = arith.constant 0 : i32
    %0 = arith.cmpi eq, %arg1, %c0_i32 : i32
    %1 = arith.extui %0 : i1 to i32
    %c0_i32_0 = arith.constant 0 : i32
    %2 = arith.cmpi ne, %1, %c0_i32_0 : i32
    scf.if %2 {
      %c0_11 = arith.constant 0 : index
      %c0_12 = arith.constant 0 : index
      %20 = vector.load %arg3[%c0_11, %c0_12] : memref<200x100xf32, #tpu.memory_space<vmem>>, vector<200x100xf32>
      %cst = arith.constant dense<0xFF800000> : vector<200xf32>
      %21 = vector.multi_reduction <maximumf>, %20, %cst [1] : vector<200x100xf32> to vector<200xf32>
      %22 = vector.shape_cast %21 : vector<200xf32> to vector<200x1xf32>
      %23 = vector.broadcast %22 : vector<200x1xf32> to vector<200x100xf32>
      %24 = arith.subf %20, %23 : vector<200x100xf32>
      %25 = math.exp %24 : vector<200x100xf32>
      %cst_13 = arith.constant dense<0.000000e+00> : vector<200xf32>
      %26 = vector.multi_reduction <add>, %25, %cst_13 [1] : vector<200x100xf32> to vector<200xf32>
      %27 = vector.shape_cast %26 : vector<200xf32> to vector<200x1xf32>
      %28 = math.log %27 : vector<200x1xf32>
      %29 = vector.broadcast %28 : vector<200x1xf32> to vector<200x100xf32>
      %30 = arith.subf %24, %29 : vector<200x100xf32>
      %c0_14 = arith.constant 0 : index
      %c0_15 = arith.constant 0 : index
      %31 = vector.load %arg3[%c0_14, %c0_15] : memref<200x100xf32, #tpu.memory_space<vmem>>, vector<200x100xf32>
      tpu.vector_store %arg3[%c0_14, %c0_15], %30 {strides = array<i32>} : memref<200x100xf32, #tpu.memory_space<vmem>>, vector<200x100xf32>,
    } else {
    }
    %c0 = arith.constant 0 : index
    %c0_1 = arith.constant 0 : index
    %3 = vector.load %arg3[%c0, %c0_1] : memref<200x100xf32, #tpu.memory_space<vmem>>, vector<200x100xf32>
    %c0_2 = arith.constant 0 : index
    %c0_3 = arith.constant 0 : index
    %c0_4 = arith.constant 0 : index
    %4 = vector.load %arg4[%c0_2, %c0_3, %c0_4] : memref<1x200x1xi32, #tpu.memory_space<vmem>>, vector<1x200x1xi32>
    %5 = vector.shape_cast %4 : vector<1x200x1xi32> to vector<200x1xi32>
    %6 = arith.index_cast %arg1 : i32 to index
    %c0_5 = arith.constant 0 : index
    %c0_6 = arith.constant 0 : index
    %7 = vector.load %arg5[%6, %c0_5, %c0_6] : memref<3x1x100xi32, #tpu.memory_space<vmem>>, vector<1x1x100xi32>
    %8 = vector.shape_cast %7 : vector<1x1x100xi32> to vector<1x100xi32>
    %9 = vector.broadcast %5 : vector<200x1xi32> to vector<200x100xi32>
    %10 = vector.broadcast %8 : vector<1x100xi32> to vector<200x100xi32>
    %11 = arith.cmpi eq, %9, %10 : vector<200x100xi32>
    %12 = arith.index_cast %arg1 : i32 to index
    %13 = memref.load %arg2[%12] : memref<3xi32, #tpu.memory_space<smem>>
    %c0_i32_7 = arith.constant 0 : i32
    %14 = arith.cmpi ne, %13, %c0_i32_7 : i32
    %15 = arith.extui %14 : i1 to i32
    %c0_i32_8 = arith.constant 0 : i32
    %16 = arith.cmpi ne, %15, %c0_i32_8 : i32
    scf.if %16 {
      %20 = arith.index_cast %arg1 : i32 to index
      %c0_11 = arith.constant 0 : index
      %c0_12 = arith.constant 0 : index
      %21 = vector.load %arg6[%20, %c0_11, %c0_12] : memref<3x1x100xf32, #tpu.memory_space<vmem>>, vector<1x1x100xf32>
      %22 = vector.shape_cast %21 : vector<1x1x100xf32> to vector<1x100xf32>
      %23 = vector.broadcast %22 : vector<1x100xf32> to vector<200x100xf32>
      %24 = arith.mulf %3, %23 : vector<200x100xf32>
      %cst = arith.constant 0.000000e+00 : f32
      %25 = vector.broadcast %cst : f32 to vector<200x100xf32>
      %26 = arith.select %11, %24, %25 : vector<200x100xi1>, vector<200x100xf32>
      %27 = vector.shape_cast %26 : vector<200x100xf32> to vector<1x200x100xf32>
      %cst_13 = arith.constant dense<0.000000e+00> : vector<1xf32>
      %28 = vector.multi_reduction <add>, %27, %cst_13 [1, 2] : vector<1x200x100xf32> to vector<1xf32>
      %29 = vector.shape_cast %28 : vector<1xf32> to vector<1x1x1xf32>
      %30 = vector.extract %29[0, 0, 0] : f32 from vector<1x1x1xf32>
      %cst_14 = arith.constant 0.000000e+00 : f32
      %31 = arith.subf %cst_14, %30 : f32
      %32 = vector.broadcast %31 : f32 to vector<1x128xf32>
      %c0_15 = arith.constant 0 : index
      %c0_16 = arith.constant 0 : index
      %c0_17 = arith.constant 0 : index
      %c0_18 = arith.constant 0 : index
      %33 = vector.load %arg7[%c0_15, %c0_16, %c0_17, %c0_18] : memref<1x1x1x128xf32, #tpu.memory_space<vmem>>, vector<1x1x1x128xf32>
      %34 = vector.shape_cast %33 : vector<1x1x1x128xf32> to vector<1x128xf32>
      %35 = vector.shape_cast %32 : vector<1x128xf32> to vector<1x1x1x128xf32>
      tpu.vector_store %arg7[%c0_15, %c0_16, %c0_17, %c0_18], %35 {strides = array<i32>} : memref<1x1x1x128xf32, #tpu.memory_space<vmem>>, vector<1x1x1x128xf32>,
    } else {
    }
    %c0_i32_9 = arith.constant 0 : i32
    %17 = arith.cmpi eq, %13, %c0_i32_9 : i32
    %18 = arith.extui %17 : i1 to i32
    %c0_i32_10 = arith.constant 0 : i32
    %19 = arith.cmpi ne, %18, %c0_i32_10 : i32
    scf.if %19 {
      %cst = arith.constant 0.000000e+00 : f32
      %20 = vector.broadcast %cst : f32 to vector<200x100xf32>
      %21 = arith.select %11, %3, %20 : vector<200x100xi1>, vector<200x100xf32>
      %22 = vector.shape_cast %21 : vector<200x100xf32> to vector<1x200x100xf32>
      %cst_11 = arith.constant dense<0.000000e+00> : vector<1xf32>
      %23 = vector.multi_reduction <add>, %22, %cst_11 [1, 2] : vector<1x200x100xf32> to vector<1xf32>
      %24 = vector.shape_cast %23 : vector<1xf32> to vector<1x1x1xf32>
      %25 = vector.extract %24[0, 0, 0] : f32 from vector<1x1x1xf32>
      %cst_12 = arith.constant 0.000000e+00 : f32
      %26 = arith.subf %cst_12, %25 : f32
      %27 = vector.broadcast %26 : f32 to vector<1x128xf32>
      %c0_13 = arith.constant 0 : index
      %c0_14 = arith.constant 0 : index
      %c0_15 = arith.constant 0 : index
      %c0_16 = arith.constant 0 : index
      %28 = vector.load %arg7[%c0_13, %c0_14, %c0_15, %c0_16] : memref<1x1x1x128xf32, #tpu.memory_space<vmem>>, vector<1x1x1x128xf32>
      %29 = vector.shape_cast %28 : vector<1x1x1x128xf32> to vector<1x128xf32>
      %30 = vector.shape_cast %27 : vector<1x128xf32> to vector<1x1x1x128xf32>
      tpu.vector_store %arg7[%c0_13, %c0_14, %c0_15, %c0_16], %30 {strides = array<i32>} : memref<1x1x1x128xf32, #tpu.memory_space<vmem>>, vector<1x1x1x128xf32>,
    } else {
    }
    return
  }
  func.func @transform_0(%arg0: i32, %arg1: i32, %arg2: memref<3xi32, #tpu.memory_space<smem>>) -> (i32, i32) {
    %c0_i32 = arith.constant 0 : i32
    %c0_i32_0 = arith.constant 0 : i32
    return %arg0, %c0_i32 : i32, i32
  }
  func.func @transform_1(%arg0: i32, %arg1: i32, %arg2: memref<3xi32, #tpu.memory_space<smem>>) -> (i32, i32, i32) {
    %c0_i32 = arith.constant 0 : i32
    %c0_i32_0 = arith.constant 0 : i32
    return %arg1, %arg0, %c0_i32 : i32, i32, i32
  }
  func.func @transform_2(%arg0: i32, %arg1: i32, %arg2: memref<3xi32, #tpu.memory_space<smem>>) -> (i32, i32, i32) {
    %c0_i32 = arith.constant 0 : i32
    %c0_i32_0 = arith.constant 0 : i32
    %c0_i32_1 = arith.constant 0 : i32
    %c0_i32_2 = arith.constant 0 : i32
    return %c0_i32, %c0_i32_0, %c0_i32_1 : i32, i32, i32
  }
  func.func @transform_3(%arg0: i32, %arg1: i32, %arg2: memref<3xi32, #tpu.memory_space<smem>>) -> (i32, i32, i32) {
    %c0_i32 = arith.constant 0 : i32
    %c0_i32_0 = arith.constant 0 : i32
    %c0_i32_1 = arith.constant 0 : i32
    %c0_i32_2 = arith.constant 0 : i32
    return %c0_i32, %c0_i32_0, %c0_i32_1 : i32, i32, i32
  }
  func.func @transform_4(%arg0: i32, %arg1: i32, %arg2: memref<3xi32, #tpu.memory_space<smem>>) -> (i32, i32, i32, i32) {
    %c0_i32 = arith.constant 0 : i32
    %c0_i32_0 = arith.constant 0 : i32
    %c0_i32_1 = arith.constant 0 : i32
    return %arg0, %arg1, %c0_i32, %c0_i32_0 : i32, i32, i32, i32
  }
}

</mosaic_0001>

<llo_original>
// kernel: tpu_custom_call.1
$region0: #{tpu_custom_call.1}
  #allocation0 [shape = 'u32[]', space=smem, size = 0x4, offset = 0x4, fixed_abs, tag = 'smem constant byte address 0x4 - core index']
  #allocation1 [shape = 'u32[144,128]{1,0:T(1,128)}', space=vmem, size = 0x12000, scoped, tag = 'internal scratch']
  #allocation2 [shape = 's32[1]{0}', space=sflag, size = 0x4, scoped, tag = 'scoped memory for tpu_custom_call.1']
  #allocation3 [shape = 'u8[512]{0}', space=smem, size = 0x200, scoped, tag = 'prefetched SMEM operand 0']
  %s0 = inlined_call_operand.vmem [shape: s32[3], index: 0, kind: input, shape index: {}]
  %s1 = inlined_call_operand.vmem [shape: f32[200,100], index: 1, kind: input, shape index: {}]
  %s2 = inlined_call_operand.vmem [shape: s32[3,200,1], index: 2, kind: input, shape index: {}]
  %s3 = inlined_call_operand.vmem [shape: s32[3,1,100], index: 3, kind: input, shape index: {}]
  %s4 = inlined_call_operand.vmem [shape: f32[3,1,100], index: 4, kind: input, shape index: {}]
  %s5 = inlined_call_operand.hbm [shape: f32[1,3,1,128], index: 5, kind: output, shape index: {}]
  %s6 = sld [smem:[#allocation0]]
  $region61: #{tpu_custom_call.1} parent=0
    _
  %s8 = ssub.s32 1, %s6
  %s9 = scalar_select 0, %s8, %s6
  %s10 = sshll.u32 %s0, 4
  %s11 = int_to_ptr.vmem [resolvable:$true] %s10
  %13 = dma.vmem_to_smem %s11, 16, [#allocation3], [#allocation2]
  %14 = dma.done [#allocation2], 16
  %15 = sfence
  $region1: #{tpu_custom_call.1} parent=0
    #allocation4 [shape = 'u8[1024]{0}', space=vmem, size = 0x400, scoped, tag = 'output window, operand 0']
    #allocation5 [shape = 's32[2]{0}', space=sflag, size = 0x8, scoped, tag = 'scoped memory for tpu_custom_call.1']
    %16 = vsyncpa [#allocation5], 0
    %s17 = scalar_lea.sflag [#allocation5], 1
    %18 = vsyncpa %s17, 0
    loop: start=0, step=1, limit=5
    $region2: #{tpu_custom_call.1} parent=1 // loop_pre_header
      _
    $region3: #{tpu_custom_call.1} parent=1 // loop_header
      %s20 = sphi 0, %s24
      %p21 = scmp.ge.s32.totalorder %s20, 5
      %s27 = sphi 0, %s39
      %s28 = sphi 0, %s35
      %s29 = sphi 0, %s27
      %s30 = sphi 0, %s28
      %s31 = sphi 0, %s29
      %s32 = sphi 0, %s30
      %s42 = sphi 0, %s44
      %s45 = sphi 0, %s42
      %s46 = sphi 0, %s45
      %s62 = sphi 0, %s46
      %s70 = sphi 0, %s72
      %s73 = sphi 0, %s70
      %s74 = sphi 0, %s73
      %s90 = sphi 0, %s74
      %s94 = sphi 0, %s94
      %s96 = sphi 0, %s94
      %s97 = sphi 0, %s96
      %s111 = sphi 0, %s97
      %s115 = sphi 0, %s115
      %s117 = sphi 0, %s115
      %s118 = sphi 0, %s117
      %s132 = sphi 0, %s118
      %s140 = sphi 0, %s142
      %s143 = sphi 0, %s140
      %s144 = sphi 0, %s143
      %s160 = sphi 0, %s144
    $region4: #{tpu_custom_call.1} parent=1 // loop_header_branch
      %23 = sbr.rel (%p21) target = $region8
    $region5: #{tpu_custom_call.1} parent=1 // loop_body
      %s25 = ssub.s32 %s20, 1
      %s26 = ssub.s32 %s20, 2
      %s33 = sadd.s32 1, %s28
      %p34 = scmp.ge.s32.totalorder %s33, 3
      %s35 = scalar_select %p34, 0, %s33
      %s36 = sadd.s32 1, %s27
      %s37 = scalar_select %p34, %s36, %s27
      %p38 = scmp.ge.s32.totalorder %s37, 1
      %s39 = scalar_select %p38, 0, %s37
      %s40 = ssub.s32 %s27, %s39
      %p41 = scmp.eq.s32.totalorder %s40, 0
      %s43 = sadd.s32 %s42, 1
      %s44 = scalar_select %p41, %s42, %s43
      %p47 = pneg %p41
      %p48 = scmp.eq.s32.totalorder %s20, 2
      %p49 = por %p47, %p48
      %p50 = scmp.ne.s32.totalorder %s42, %s45
      %p51 = scmp.eq.s32.totalorder %s20, 0
      %p52 = por %p50, %p51
      %p53 = scmp.ne.s32.totalorder %s42, %s45
      %p54 = scmp.eq.s32.totalorder %s25, 2
      %p55 = por %p53, %p54
      %p56 = scmp.ne.s32.totalorder %s45, %s46
      %p57 = scmp.eq.s32.totalorder %s25, 0
      %p58 = por %p56, %p57
      %p59 = scmp.ne.s32.totalorder %s45, %s46
      %p60 = scmp.eq.s32.totalorder %s26, 2
      %p61 = por %p59, %p60
      %p63 = scmp.ne.s32.totalorder %s46, %s62
      %p64 = scmp.eq.s32.totalorder %s26, 0
      %p65 = por %p63, %p64
      %s66 = ssub.s32 %s28, %s35
      %s67 = ssub.s32 %s27, %s39
      %s68 = sor.u32 %s66, %s67
      %p69 = scmp.eq.s32.totalorder %s68, 0
      %s71 = sadd.s32 %s70, 1
      %s72 = scalar_select %p69, %s70, %s71
      %p75 = pneg %p69
      %p76 = scmp.eq.s32.totalorder %s20, 2
      %p77 = por %p75, %p76
      %p78 = scmp.ne.s32.totalorder %s70, %s73
      %p79 = scmp.eq.s32.totalorder %s20, 0
      %p80 = por %p78, %p79
      %p81 = scmp.ne.s32.totalorder %s70, %s73
      %p82 = scmp.eq.s32.totalorder %s25, 2
      %p83 = por %p81, %p82
      %p84 = scmp.ne.s32.totalorder %s73, %s74
      %p85 = scmp.eq.s32.totalorder %s25, 0
      %p86 = por %p84, %p85
      %p87 = scmp.ne.s32.totalorder %s73, %s74
      %p88 = scmp.eq.s32.totalorder %s26, 2
      %p89 = por %p87, %p88
      %p91 = scmp.ne.s32.totalorder %s74, %s90
      %p92 = scmp.eq.s32.totalorder %s26, 0
      %p93 = por %p91, %p92
      %s95 = sadd.s32 %s94, 1
      %p98 = scmp.eq.s32.totalorder %s20, 2
      %p99 = scmp.ne.s32.totalorder %s94, %s96
      %p100 = scmp.eq.s32.totalorder %s20, 0
      %p101 = por %p99, %p100
      %p102 = scmp.ne.s32.totalorder %s94, %s96
      %p103 = scmp.eq.s32.totalorder %s25, 2
      %p104 = por %p102, %p103
      %p105 = scmp.ne.s32.totalorder %s96, %s97
      %p106 = scmp.eq.s32.totalorder %s25, 0
      %p107 = por %p105, %p106
      %p108 = scmp.ne.s32.totalorder %s96, %s97
      %p109 = scmp.eq.s32.totalorder %s26, 2
      %p110 = por %p108, %p109
      %p112 = scmp.ne.s32.totalorder %s97, %s111
      %p113 = scmp.eq.s32.totalorder %s26, 0
      %p114 = por %p112, %p113
      %s116 = sadd.s32 %s115, 1
      %p119 = scmp.eq.s32.totalorder %s20, 2
      %p120 = scmp.ne.s32.totalorder %s115, %s117
      %p121 = scmp.eq.s32.totalorder %s20, 0
      %p122 = por %p120, %p121
      %p123 = scmp.ne.s32.totalorder %s115, %s117
      %p124 = scmp.eq.s32.totalorder %s25, 2
      %p125 = por %p123, %p124
      %p126 = scmp.ne.s32.totalorder %s117, %s118
      %p127 = scmp.eq.s32.totalorder %s25, 0
      %p128 = por %p126, %p127
      %p129 = scmp.ne.s32.totalorder %s117, %s118
      %p130 = scmp.eq.s32.totalorder %s26, 2
      %p131 = por %p129, %p130
      %p133 = scmp.ne.s32.totalorder %s118, %s132
      %p134 = scmp.eq.s32.totalorder %s26, 0
      %p135 = por %p133, %p134
      %s136 = ssub.s32 %s27, %s39
      %s137 = ssub.s32 %s28, %s35
      %s138 = sor.u32 %s136, %s137
      %p139 = scmp.eq.s32.totalorder %s138, 0
      %s141 = sadd.s32 %s140, 1
      %s142 = scalar_select %p139, %s140, %s141
      %p145 = pneg %p139
      %p146 = scmp.eq.s32.totalorder %s20, 2
      %p147 = por %p145, %p146
      %p148 = scmp.ne.s32.totalorder %s140, %s143
      %p149 = scmp.eq.s32.totalorder %s20, 0
      %p150 = por %p148, %p149
      %p151 = scmp.ne.s32.totalorder %s140, %s143
      %p152 = scmp.eq.s32.totalorder %s25, 2
      %p153 = por %p151, %p152
      %p154 = scmp.ne.s32.totalorder %s143, %s144
      %p155 = scmp.eq.s32.totalorder %s25, 0
      %p156 = por %p154, %p155
      %p157 = scmp.ne.s32.totalorder %s143, %s144
      %p158 = scmp.eq.s32.totalorder %s26, 2
      %p159 = por %p157, %p158
      %p161 = scmp.ne.s32.totalorder %s144, %s160
      %p162 = scmp.eq.s32.totalorder %s26, 0
      %p163 = por %p161, %p162
      %p164 = scmp.le.s32.totalorder 1, %s20
      %p165 = scmp.lt.s32.totalorder %s20, 4
      %p166 = pnand %p164, %p165
      %p167 = pneg %p166
      // Predicated region
      $region9: #{tpu_custom_call.1} parent=5 // pred_check
        _
      $region10: #{tpu_custom_call.1} parent=5 // pred_check_branch
        %169 = sbr.rel (%p166) target = $region12
      $region11: #{tpu_custom_call.1} parent=5 // pred_region
        %s170 = ssub.s32 %s20, 1
        // Predicated region
        $region13: #{tpu_custom_call.1} parent=11 // pred_check
          %p171 = pneg %p58
        $region14: #{tpu_custom_call.1} parent=11 // pred_check_branch
          %173 = sbr.rel (%p171) target = $region16
        $region15: #{tpu_custom_call.1} parent=11 // pred_region
          %s174 = smul.u32 25, %s29
          %p175 = scmp.lt.s32.totalorder %s174, 24
          %s176 = scalar_select %p175, %s174, 24
          %s177 = smul.addr %s176, 8
          %s178 = scalar_lea.vmem %s1, %s177
          %s179 = smul.u32 25, %s29
        $region16: #{tpu_custom_call.1} parent=11 // pred_fallthru
          _
        // Predicated region
        $region17: #{tpu_custom_call.1} parent=11 // pred_check
          %p180 = pneg %p107
        $region18: #{tpu_custom_call.1} parent=11 // pred_check_branch
          %182 = sbr.rel (%p180) target = $region20
        $region19: #{tpu_custom_call.1} parent=11 // pred_region
          _
        $region20: #{tpu_custom_call.1} parent=11 // pred_fallthru
          _
        // Predicated region
        $region21: #{tpu_custom_call.1} parent=11 // pred_check
          %p183 = pneg %p128
        $region22: #{tpu_custom_call.1} parent=11 // pred_check_branch
          %185 = sbr.rel (%p183) target = $region24
        $region23: #{tpu_custom_call.1} parent=11 // pred_region
          _
        $region24: #{tpu_custom_call.1} parent=11 // pred_fallthru
          _
      $region12: #{tpu_custom_call.1} parent=5 // pred_fallthru
        _
      %p186 = scmp.lt.s32.totalorder %s20, 3
      // Predicated region
      $region25: #{tpu_custom_call.1} parent=5 // pred_check
        %p187 = pneg %p186
      $region26: #{tpu_custom_call.1} parent=5 // pred_check_branch
        %189 = sbr.rel (%p187) target = $region28
      $region27: #{tpu_custom_call.1} parent=5 // pred_region
        // Predicated region
        $region29: #{tpu_custom_call.1} parent=27 // pred_check
          %p190 = pneg %p80
        $region30: #{tpu_custom_call.1} parent=27 // pred_check_branch
          %192 = sbr.rel (%p190) target = $region32
        $region31: #{tpu_custom_call.1} parent=27 // pred_region
          %s193 = smul.u32 25, %s27
          %p194 = scmp.lt.s32.totalorder %s28, 2
          %s195 = scalar_select %p194, %s28, 2
          %p196 = scmp.lt.s32.totalorder %s193, 24
          %s197 = scalar_select %p196, %s193, 24
          %s198 = smul.addr %s195, 25
          %s199 = sadd.s32 %s197, %s198
          %s200 = smul.addr %s199, 8
          %s201 = scalar_lea.vmem %s2, %s200
          %s202 = smul.u32 25, %s27
        $region32: #{tpu_custom_call.1} parent=27 // pred_fallthru
          _
      $region28: #{tpu_custom_call.1} parent=5 // pred_fallthru
        _
      %p203 = scmp.le.s32.totalorder 1, %s20
      %p204 = scmp.lt.s32.totalorder %s20, 4
      %p205 = pnand %p203, %p204
      %p206 = pneg %p205
      // Predicated region
      $region33: #{tpu_custom_call.1} parent=5 // pred_check
        _
      $region34: #{tpu_custom_call.1} parent=5 // pred_check_branch
        %208 = sbr.rel (%p205) target = $region36
      $region35: #{tpu_custom_call.1} parent=5 // pred_region
        %s209 = ssub.s32 %s20, 1
        %s210 = smul.u32 25, %s29
        %p211 = scmp.lt.s32.totalorder %s210, 24
        %s212 = scalar_select %p211, %s210, 24
        %s213 = smul.addr %s212, 8
        %s214 = scalar_lea.vmem %s1, %s213
        %p215 = pneg %p58
        %p216 = pneg %p55
        %s217 = smul.u32 25, %s29
        %p218 = scmp.lt.s32.totalorder %s30, 2
        %s219 = scalar_select %p218, %s30, 2
        %p220 = scmp.lt.s32.totalorder %s217, 24
        %s221 = scalar_select %p220, %s217, 24
        %s222 = smul.addr %s219, 25
        %s223 = sadd.s32 %s221, %s222
        %s224 = smul.addr %s223, 8
        %s225 = scalar_lea.vmem %s2, %s224
        %p226 = pneg %p86
        %p227 = pneg %p83
        %p228 = pneg %p107
        %p229 = pneg %p104
        %p230 = pneg %p128
        %p231 = pneg %p125
        %p232 = pneg %p156
        %p233 = pneg %p153
        %s234 = sand.u32 %s143, 1
        %s235 = scalar_lea.sflag [#allocation5], %s234
        %s236 = sand.u32 %s143, 1
        %s237 = scalar_lea.vmem [#allocation4], %s236
        %s238 = smul.u32 25, %s29
        %p239 = scmp.lt.s32.totalorder %s238, 24
        %s240 = scalar_select %p239, %s238, 24
        %s241 = smul.addr %s240, 8
        %s242 = scalar_lea.vmem %s1, %s241
        %s243 = smul.u32 25, %s29
        %s244 = smul.u32 25, %s29
        %p245 = scmp.lt.s32.totalorder %s30, 2
        %s246 = scalar_select %p245, %s30, 2
        %p247 = scmp.lt.s32.totalorder %s244, 24
        %s248 = scalar_select %p247, %s244, 24
        %s249 = smul.addr %s246, 25
        %s250 = sadd.s32 %s248, %s249
        %s251 = smul.addr %s250, 8
        %s252 = scalar_lea.vmem %s2, %s251
        %s253 = smul.u32 25, %s29
        %p254 = scmp.eq.s32.totalorder %s30, 0
        // Predicated region
        $region37: #{tpu_custom_call.1} parent=35 // pred_check
          %p255 = pneg %p254
        $region38: #{tpu_custom_call.1} parent=35 // pred_check_branch
          %257 = sbr.rel (%p255) target = $region40
        $region39: #{tpu_custom_call.1} parent=35 // pred_region
          %v258 = vld [vmem:[%s242] sm:$0xff]
          %v259 = vld [vmem:[%s242 + $0x8] sm:$0xff]
          %v260 = vld [vmem:[%s242 + $0x10] sm:$0xff]
          %v261 = vld [vmem:[%s242 + $0x18] sm:$0xff]
          %v262 = vld [vmem:[%s242 + $0x20] sm:$0xff]
          %v263 = vld [vmem:[%s242 + $0x28] sm:$0xff]
          %v264 = vld [vmem:[%s242 + $0x30] sm:$0xff]
          %v265 = vld [vmem:[%s242 + $0x38] sm:$0xff]
          %v266 = vld [vmem:[%s242 + $0x40] sm:$0xff]
          %v267 = vld [vmem:[%s242 + $0x48] sm:$0xff]
          %v268 = vld [vmem:[%s242 + $0x50] sm:$0xff]
          %v269 = vld [vmem:[%s242 + $0x58] sm:$0xff]
          %v270 = vld [vmem:[%s242 + $0x60] sm:$0xff]
          %v271 = vld [vmem:[%s242 + $0x68] sm:$0xff]
          %v272 = vld [vmem:[%s242 + $0x70] sm:$0xff]
          %v273 = vld [vmem:[%s242 + $0x78] sm:$0xff]
          %v274 = vld [vmem:[%s242 + $0x80] sm:$0xff]
          %v275 = vld [vmem:[%s242 + $0x88] sm:$0xff]
          %v276 = vld [vmem:[%s242 + $0x90] sm:$0xff]
          %v277 = vld [vmem:[%s242 + $0x98] sm:$0xff]
          %v278 = vld [vmem:[%s242 + $0xa0] sm:$0xff]
          %v279 = vld [vmem:[%s242 + $0xa8] sm:$0xff]
          %v280 = vld [vmem:[%s242 + $0xb0] sm:$0xff]
          %v281 = vld [vmem:[%s242 + $0xb8] sm:$0xff]
          %v282 = vld [vmem:[%s242 + $0xc0] sm:$0xff]
          %vm283 = vcmask 818176
          %v284 = vsel %vm283, %v258, -inf
          %285 = vmax.xlane.f32.xlu0 %v284
          %v286 = vpop.xlane.xlu0 %285
          %v287 = vsel %vm283, %v259, -inf
          %288 = vmax.xlane.f32.xlu0 %v287
          %v289 = vpop.xlane.xlu0 %288
          %v290 = vsel %vm283, %v260, -inf
          %291 = vmax.xlane.f32.xlu0 %v290
          %v292 = vpop.xlane.xlu0 %291
          %v293 = vsel %vm283, %v261, -inf
          %294 = vmax.xlane.f32.xlu0 %v293
          %v295 = vpop.xlane.xlu0 %294
          %v296 = vsel %vm283, %v262, -inf
          %297 = vmax.xlane.f32.xlu0 %v296
          %v298 = vpop.xlane.xlu0 %297
          %v299 = vsel %vm283, %v263, -inf
          %300 = vmax.xlane.f32.xlu0 %v299
          %v301 = vpop.xlane.xlu0 %300
          %v302 = vsel %vm283, %v264, -inf
          %303 = vmax.xlane.f32.xlu0 %v302
          %v304 = vpop.xlane.xlu0 %303
          %v305 = vsel %vm283, %v265, -inf
          %306 = vmax.xlane.f32.xlu0 %v305
          %v307 = vpop.xlane.xlu0 %306
          %v308 = vsel %vm283, %v266, -inf
          %309 = vmax.xlane.f32.xlu0 %v308
          %v310 = vpop.xlane.xlu0 %309
          %v311 = vsel %vm283, %v267, -inf
          %312 = vmax.xlane.f32.xlu0 %v311
          %v313 = vpop.xlane.xlu0 %312
          %v314 = vsel %vm283, %v268, -inf
          %315 = vmax.xlane.f32.xlu0 %v314
          %v316 = vpop.xlane.xlu0 %315
          %v317 = vsel %vm283, %v269, -inf
          %318 = vmax.xlane.f32.xlu0 %v317
          %v319 = vpop.xlane.xlu0 %318
          %v320 = vsel %vm283, %v270, -inf
          %321 = vmax.xlane.f32.xlu0 %v320
          %v322 = vpop.xlane.xlu0 %321
          %v323 = vsel %vm283, %v271, -inf
          %324 = vmax.xlane.f32.xlu0 %v323
          %v325 = vpop.xlane.xlu0 %324
          %v326 = vsel %vm283, %v272, -inf
          %327 = vmax.xlane.f32.xlu0 %v326
          %v328 = vpop.xlane.xlu0 %327
          %v329 = vsel %vm283, %v273, -inf
          %330 = vmax.xlane.f32.xlu0 %v329
          %v331 = vpop.xlane.xlu0 %330
          %v332 = vsel %vm283, %v274, -inf
          %333 = vmax.xlane.f32.xlu0 %v332
          %v334 = vpop.xlane.xlu0 %333
          %v335 = vsel %vm283, %v275, -inf
          %336 = vmax.xlane.f32.xlu0 %v335
          %v337 = vpop.xlane.xlu0 %336
          %v338 = vsel %vm283, %v276, -inf
          %339 = vmax.xlane.f32.xlu0 %v338
          %v340 = vpop.xlane.xlu0 %339
          %v341 = vsel %vm283, %v277, -inf
          %342 = vmax.xlane.f32.xlu0 %v341
          %v343 = vpop.xlane.xlu0 %342
          %v344 = vsel %vm283, %v278, -inf
          %345 = vmax.xlane.f32.xlu0 %v344
          %v346 = vpop.xlane.xlu0 %345
          %v347 = vsel %vm283, %v279, -inf
          %348 = vmax.xlane.f32.xlu0 %v347
          %v349 = vpop.xlane.xlu0 %348
          %v350 = vsel %vm283, %v280, -inf
          %351 = vmax.xlane.f32.xlu0 %v350
          %v352 = vpop.xlane.xlu0 %351
          %v353 = vsel %vm283, %v281, -inf
          %354 = vmax.xlane.f32.xlu0 %v353
          %v355 = vpop.xlane.xlu0 %354
          %v356 = vsel %vm283, %v282, -inf
          %357 = vmax.xlane.f32.xlu0 %v356
          %v358 = vpop.xlane.xlu0 %357
          %v359 = vsub.f32 %v258, %v286
          %v360 = vsub.f32 %v259, %v289
          %v361 = vsub.f32 %v260, %v292
          %v362 = vsub.f32 %v261, %v295
          %v363 = vsub.f32 %v262, %v298
          %v364 = vsub.f32 %v263, %v301
          %v365 = vsub.f32 %v264, %v304
          %v366 = vsub.f32 %v265, %v307
          %v367 = vsub.f32 %v266, %v310
          %v368 = vsub.f32 %v267, %v313
          %v369 = vsub.f32 %v268, %v316
          %v370 = vsub.f32 %v269, %v319
          %v371 = vsub.f32 %v270, %v322
          %v372 = vsub.f32 %v271, %v325
          %v373 = vsub.f32 %v272, %v328
          %v374 = vsub.f32 %v273, %v331
          %v375 = vsub.f32 %v274, %v334
          %v376 = vsub.f32 %v275, %v337
          %v377 = vsub.f32 %v276, %v340
          %v378 = vsub.f32 %v277, %v343
          %v379 = vsub.f32 %v278, %v346
          %v380 = vsub.f32 %v279, %v349
          %v381 = vsub.f32 %v280, %v352
          %v382 = vsub.f32 %v281, %v355
          %v383 = vsub.f32 %v282, %v358
          %v384 = vmul.f32 %v359, 1.442695
          %v385 = vpow.pop %v384
          %v386 = vmul.f32 %v360, 1.442695
          %v387 = vpow.pop %v386
          %v388 = vmul.f32 %v361, 1.442695
          %v389 = vpow.pop %v388
          %v390 = vmul.f32 %v362, 1.442695
          %v391 = vpow.pop %v390
          %v392 = vmul.f32 %v363, 1.442695
          %v393 = vpow.pop %v392
          %v394 = vmul.f32 %v364, 1.442695
          %v395 = vpow.pop %v394
          %v396 = vmul.f32 %v365, 1.442695
          %v397 = vpow.pop %v396
          %v398 = vmul.f32 %v366, 1.442695
          %v399 = vpow.pop %v398
          %v400 = vmul.f32 %v367, 1.442695
          %v401 = vpow.pop %v400
          %v402 = vmul.f32 %v368, 1.442695
          %v403 = vpow.pop %v402
          %v404 = vmul.f32 %v369, 1.442695
          %v405 = vpow.pop %v404
          %v406 = vmul.f32 %v370, 1.442695
          %v407 = vpow.pop %v406
          %v408 = vmul.f32 %v371, 1.442695
          %v409 = vpow.pop %v408
          %v410 = vmul.f32 %v372, 1.442695
          %v411 = vpow.pop %v410
          %v412 = vmul.f32 %v373, 1.442695
          %v413 = vpow.pop %v412
          %v414 = vmul.f32 %v374, 1.442695
          %v415 = vpow.pop %v414
          %v416 = vmul.f32 %v375, 1.442695
          %v417 = vpow.pop %v416
          %v418 = vmul.f32 %v376, 1.442695
          %v419 = vpow.pop %v418
          %v420 = vmul.f32 %v377, 1.442695
          %v421 = vpow.pop %v420
          %v422 = vmul.f32 %v378, 1.442695
          %v423 = vpow.pop %v422
          %v424 = vmul.f32 %v379, 1.442695
          %v425 = vpow.pop %v424
          %v426 = vmul.f32 %v380, 1.442695
          %v427 = vpow.pop %v426
          %v428 = vmul.f32 %v381, 1.442695
          %v429 = vpow.pop %v428
          %v430 = vmul.f32 %v382, 1.442695
          %v431 = vpow.pop %v430
          %v432 = vmul.f32 %v383, 1.442695
          %v433 = vpow.pop %v432
          %v434 = vsel %vm283, %v385, 0.0
          %435 = vadd.xlane.f32.xlu0 %v434
          %v436 = vpop.xlane.xlu0 %435
          %v437 = vsel %vm283, %v387, 0.0
          %438 = vadd.xlane.f32.xlu0 %v437
          %v439 = vpop.xlane.xlu0 %438
          %v440 = vsel %vm283, %v389, 0.0
          %441 = vadd.xlane.f32.xlu0 %v440
          %v442 = vpop.xlane.xlu0 %441
          %v443 = vsel %vm283, %v391, 0.0
          %444 = vadd.xlane.f32.xlu0 %v443
          %v445 = vpop.xlane.xlu0 %444
          %v446 = vsel %vm283, %v393, 0.0
          %447 = vadd.xlane.f32.xlu0 %v446
          %v448 = vpop.xlane.xlu0 %447
          %v449 = vsel %vm283, %v395, 0.0
          %450 = vadd.xlane.f32.xlu0 %v449
          %v451 = vpop.xlane.xlu0 %450
          %v452 = vsel %vm283, %v397, 0.0
          %453 = vadd.xlane.f32.xlu0 %v452
          %v454 = vpop.xlane.xlu0 %453
          %v455 = vsel %vm283, %v399, 0.0
          %456 = vadd.xlane.f32.xlu0 %v455
          %v457 = vpop.xlane.xlu0 %456
          %v458 = vsel %vm283, %v401, 0.0
          %459 = vadd.xlane.f32.xlu0 %v458
          %v460 = vpop.xlane.xlu0 %459
          %v461 = vsel %vm283, %v403, 0.0
          %462 = vadd.xlane.f32.xlu0 %v461
          %v463 = vpop.xlane.xlu0 %462
          %v464 = vsel %vm283, %v405, 0.0
          %465 = vadd.xlane.f32.xlu0 %v464
          %v466 = vpop.xlane.xlu0 %465
          %v467 = vsel %vm283, %v407, 0.0
          %468 = vadd.xlane.f32.xlu0 %v467
          %v469 = vpop.xlane.xlu0 %468
          %v470 = vsel %vm283, %v409, 0.0
          %471 = vadd.xlane.f32.xlu0 %v470
          %v472 = vpop.xlane.xlu0 %471
          %v473 = vsel %vm283, %v411, 0.0
          %474 = vadd.xlane.f32.xlu0 %v473
          %v475 = vpop.xlane.xlu0 %474
          %v476 = vsel %vm283, %v413, 0.0
          %477 = vadd.xlane.f32.xlu0 %v476
          %v478 = vpop.xlane.xlu0 %477
          %v479 = vsel %vm283, %v415, 0.0
          %480 = vadd.xlane.f32.xlu0 %v479
          %v481 = vpop.xlane.xlu0 %480
          %v482 = vsel %vm283, %v417, 0.0
          %483 = vadd.xlane.f32.xlu0 %v482
          %v484 = vpop.xlane.xlu0 %483
          %v485 = vsel %vm283, %v419, 0.0
          %486 = vadd.xlane.f32.xlu0 %v485
          %v487 = vpop.xlane.xlu0 %486
          %v488 = vsel %vm283, %v421, 0.0
          %489 = vadd.xlane.f32.xlu0 %v488
          %v490 = vpop.xlane.xlu0 %489
          %v491 = vsel %vm283, %v423, 0.0
          %492 = vadd.xlane.f32.xlu0 %v491
          %v493 = vpop.xlane.xlu0 %492
          %v494 = vsel %vm283, %v425, 0.0
          %495 = vadd.xlane.f32.xlu0 %v494
          %v496 = vpop.xlane.xlu0 %495
          %v497 = vsel %vm283, %v427, 0.0
          %498 = vadd.xlane.f32.xlu0 %v497
          %v499 = vpop.xlane.xlu0 %498
          %v500 = vsel %vm283, %v429, 0.0
          %501 = vadd.xlane.f32.xlu0 %v500
          %v502 = vpop.xlane.xlu0 %501
          %v503 = vsel %vm283, %v431, 0.0
          %504 = vadd.xlane.f32.xlu0 %v503
          %v505 = vpop.xlane.xlu0 %504
          %v506 = vsel %vm283, %v433, 0.0
          %507 = vadd.xlane.f32.xlu0 %v506
          %v508 = vpop.xlane.xlu0 %507
          %v509 = vlog2.pop %v436
          %v510 = vmul.f32 %v509, 0.6931472
          %v511 = vlog2.pop %v439
          %v512 = vmul.f32 %v511, 0.6931472
          %v513 = vlog2.pop %v442
          %v514 = vmul.f32 %v513, 0.6931472
          %v515 = vlog2.pop %v445
          %v516 = vmul.f32 %v515, 0.6931472
          %v517 = vlog2.pop %v448
          %v518 = vmul.f32 %v517, 0.6931472
          %v519 = vlog2.pop %v451
          %v520 = vmul.f32 %v519, 0.6931472
          %v521 = vlog2.pop %v454
          %v522 = vmul.f32 %v521, 0.6931472
          %v523 = vlog2.pop %v457
          %v524 = vmul.f32 %v523, 0.6931472
          %v525 = vlog2.pop %v460
          %v526 = vmul.f32 %v525, 0.6931472
          %v527 = vlog2.pop %v463
          %v528 = vmul.f32 %v527, 0.6931472
          %v529 = vlog2.pop %v466
          %v530 = vmul.f32 %v529, 0.6931472
          %v531 = vlog2.pop %v469
          %v532 = vmul.f32 %v531, 0.6931472
          %v533 = vlog2.pop %v472
          %v534 = vmul.f32 %v533, 0.6931472
          %v535 = vlog2.pop %v475
          %v536 = vmul.f32 %v535, 0.6931472
          %v537 = vlog2.pop %v478
          %v538 = vmul.f32 %v537, 0.6931472
          %v539 = vlog2.pop %v481
          %v540 = vmul.f32 %v539, 0.6931472
          %v541 = vlog2.pop %v484
          %v542 = vmul.f32 %v541, 0.6931472
          %v543 = vlog2.pop %v487
          %v544 = vmul.f32 %v543, 0.6931472
          %v545 = vlog2.pop %v490
          %v546 = vmul.f32 %v545, 0.6931472
          %v547 = vlog2.pop %v493
          %v548 = vmul.f32 %v547, 0.6931472
          %v549 = vlog2.pop %v496
          %v550 = vmul.f32 %v549, 0.6931472
          %v551 = vlog2.pop %v499
          %v552 = vmul.f32 %v551, 0.6931472
          %v553 = vlog2.pop %v502
          %v554 = vmul.f32 %v553, 0.6931472
          %v555 = vlog2.pop %v505
          %v556 = vmul.f32 %v555, 0.6931472
          %v557 = vlog2.pop %v508
          %v558 = vmul.f32 %v557, 0.6931472
          %v559 = vsub.f32 %v359, %v510
          %v560 = vsub.f32 %v360, %v512
          %v561 = vsub.f32 %v361, %v514
          %v562 = vsub.f32 %v362, %v516
          %v563 = vsub.f32 %v363, %v518
          %v564 = vsub.f32 %v364, %v520
          %v565 = vsub.f32 %v365, %v522
          %v566 = vsub.f32 %v366, %v524
          %v567 = vsub.f32 %v367, %v526
          %v568 = vsub.f32 %v368, %v528
          %v569 = vsub.f32 %v369, %v530
          %v570 = vsub.f32 %v370, %v532
          %v571 = vsub.f32 %v371, %v534
          %v572 = vsub.f32 %v372, %v536
          %v573 = vsub.f32 %v373, %v538
          %v574 = vsub.f32 %v374, %v540
          %v575 = vsub.f32 %v375, %v542
          %v576 = vsub.f32 %v376, %v544
          %v577 = vsub.f32 %v377, %v546
          %v578 = vsub.f32 %v378, %v548
          %v579 = vsub.f32 %v379, %v550
          %v580 = vsub.f32 %v380, %v552
          %v581 = vsub.f32 %v381, %v554
          %v582 = vsub.f32 %v382, %v556
          %v583 = vsub.f32 %v383, %v558
          %584 = vst.msk [vmem:[%s242] sm:$0xff] %vm283, %v559
          %585 = vst.msk [vmem:[%s242 + $0x8] sm:$0xff] %vm283, %v560
          %586 = vst.msk [vmem:[%s242 + $0x10] sm:$0xff] %vm283, %v561
          %587 = vst.msk [vmem:[%s242 + $0x18] sm:$0xff] %vm283, %v562
          %588 = vst.msk [vmem:[%s242 + $0x20] sm:$0xff] %vm283, %v563
          %589 = vst.msk [vmem:[%s242 + $0x28] sm:$0xff] %vm283, %v564
          %590 = vst.msk [vmem:[%s242 + $0x30] sm:$0xff] %vm283, %v565
          %591 = vst.msk [vmem:[%s242 + $0x38] sm:$0xff] %vm283, %v566
          %592 = vst.msk [vmem:[%s242 + $0x40] sm:$0xff] %vm283, %v567
          %593 = vst.msk [vmem:[%s242 + $0x48] sm:$0xff] %vm283, %v568
          %594 = vst.msk [vmem:[%s242 + $0x50] sm:$0xff] %vm283, %v569
          %595 = vst.msk [vmem:[%s242 + $0x58] sm:$0xff] %vm283, %v570
          %596 = vst.msk [vmem:[%s242 + $0x60] sm:$0xff] %vm283, %v571
          %597 = vst.msk [vmem:[%s242 + $0x68] sm:$0xff] %vm283, %v572
          %598 = vst.msk [vmem:[%s242 + $0x70] sm:$0xff] %vm283, %v573
          %599 = vst.msk [vmem:[%s242 + $0x78] sm:$0xff] %vm283, %v574
          %600 = vst.msk [vmem:[%s242 + $0x80] sm:$0xff] %vm283, %v575
          %601 = vst.msk [vmem:[%s242 + $0x88] sm:$0xff] %vm283, %v576
          %602 = vst.msk [vmem:[%s242 + $0x90] sm:$0xff] %vm283, %v577
          %603 = vst.msk [vmem:[%s242 + $0x98] sm:$0xff] %vm283, %v578
          %604 = vst.msk [vmem:[%s242 + $0xa0] sm:$0xff] %vm283, %v579
          %605 = vst.msk [vmem:[%s242 + $0xa8] sm:$0xff] %vm283, %v580
          %606 = vst.msk [vmem:[%s242 + $0xb0] sm:$0xff] %vm283, %v581
          %607 = vst.msk [vmem:[%s242 + $0xb8] sm:$0xff] %vm283, %v582
          %608 = vst.msk [vmem:[%s242 + $0xc0] sm:$0xff] %vm283, %v583
        $region40: #{tpu_custom_call.1} parent=35 // pred_fallthru
          _
        %v609 = vld [vmem:[%s242] sm:$0xff]
        %v610 = vld [vmem:[%s242 + $0x8] sm:$0xff]
        %v611 = vld [vmem:[%s242 + $0x10] sm:$0xff]
        %v612 = vld [vmem:[%s242 + $0x18] sm:$0xff]
        %v613 = vld [vmem:[%s242 + $0x20] sm:$0xff]
        %v614 = vld [vmem:[%s242 + $0x28] sm:$0xff]
        %v615 = vld [vmem:[%s242 + $0x30] sm:$0xff]
        %v616 = vld [vmem:[%s242 + $0x38] sm:$0xff]
        %v617 = vld [vmem:[%s242 + $0x40] sm:$0xff]
        %v618 = vld [vmem:[%s242 + $0x48] sm:$0xff]
        %v619 = vld [vmem:[%s242 + $0x50] sm:$0xff]
        %v620 = vld [vmem:[%s242 + $0x58] sm:$0xff]
        %v621 = vld [vmem:[%s242 + $0x60] sm:$0xff]
        %v622 = vld [vmem:[%s242 + $0x68] sm:$0xff]
        %v623 = vld [vmem:[%s242 + $0x70] sm:$0xff]
        %v624 = vld [vmem:[%s242 + $0x78] sm:$0xff]
        %v625 = vld [vmem:[%s242 + $0x80] sm:$0xff]
        %v626 = vld [vmem:[%s242 + $0x88] sm:$0xff]
        %v627 = vld [vmem:[%s242 + $0x90] sm:$0xff]
        %v628 = vld [vmem:[%s242 + $0x98] sm:$0xff]
        %v629 = vld [vmem:[%s242 + $0xa0] sm:$0xff]
        %v630 = vld [vmem:[%s242 + $0xa8] sm:$0xff]
        %v631 = vld [vmem:[%s242 + $0xb0] sm:$0xff]
        %v632 = vld [vmem:[%s242 + $0xb8] sm:$0xff]
        %v633 = vld [vmem:[%s242 + $0xc0] sm:$0xff]
        %v634 = vld [vmem:[%s252] sm:$0xff]
        %v635 = vld [vmem:[%s252 + $0x8] sm:$0xff]
        %v636 = vld [vmem:[%s252 + $0x10] sm:$0xff]
        %v637 = vld [vmem:[%s252 + $0x18] sm:$0xff]
        %v638 = vld [vmem:[%s252 + $0x20] sm:$0xff]
        %v639 = vld [vmem:[%s252 + $0x28] sm:$0xff]
        %v640 = vld [vmem:[%s252 + $0x30] sm:$0xff]
        %v641 = vld [vmem:[%s252 + $0x38] sm:$0xff]
        %v642 = vld [vmem:[%s252 + $0x40] sm:$0xff]
        %v643 = vld [vmem:[%s252 + $0x48] sm:$0xff]
        %v644 = vld [vmem:[%s252 + $0x50] sm:$0xff]
        %v645 = vld [vmem:[%s252 + $0x58] sm:$0xff]
        %v646 = vld [vmem:[%s252 + $0x60] sm:$0xff]
        %v647 = vld [vmem:[%s252 + $0x68] sm:$0xff]
        %v648 = vld [vmem:[%s252 + $0x70] sm:$0xff]
        %v649 = vld [vmem:[%s252 + $0x78] sm:$0xff]
        %v650 = vld [vmem:[%s252 + $0x80] sm:$0xff]
        %v651 = vld [vmem:[%s252 + $0x88] sm:$0xff]
        %v652 = vld [vmem:[%s252 + $0x90] sm:$0xff]
        %v653 = vld [vmem:[%s252 + $0x98] sm:$0xff]
        %v654 = vld [vmem:[%s252 + $0xa0] sm:$0xff]
        %v655 = vld [vmem:[%s252 + $0xa8] sm:$0xff]
        %v656 = vld [vmem:[%s252 + $0xb0] sm:$0xff]
        %v657 = vld [vmem:[%s252 + $0xb8] sm:$0xff]
        %v658 = vld [vmem:[%s252 + $0xc0] sm:$0xff]
        %s659 = scalar_lea.vmem %s3, %s30
        %v660 = vld [vmem:[%s659] sm:$0x1]
        %661 = vset.pattern.permute.xlu0 0
        %662 = vperm.xlu0 %661, %v634
        %v663 = vpop.permute.xlu0 %662
        %664 = vset.pattern.permute.xlu0 0
        %665 = vperm.xlu0 %664, %v635
        %v666 = vpop.permute.xlu0 %665
        %667 = vset.pattern.permute.xlu0 0
        %668 = vperm.xlu0 %667, %v636
        %v669 = vpop.permute.xlu0 %668
        %670 = vset.pattern.permute.xlu0 0
        %671 = vperm.xlu0 %670, %v637
        %v672 = vpop.permute.xlu0 %671
        %673 = vset.pattern.permute.xlu0 0
        %674 = vperm.xlu0 %673, %v638
        %v675 = vpop.permute.xlu0 %674
        %676 = vset.pattern.permute.xlu0 0
        %677 = vperm.xlu0 %676, %v639
        %v678 = vpop.permute.xlu0 %677
        %679 = vset.pattern.permute.xlu0 0
        %680 = vperm.xlu0 %679, %v640
        %v681 = vpop.permute.xlu0 %680
        %682 = vset.pattern.permute.xlu0 0
        %683 = vperm.xlu0 %682, %v641
        %v684 = vpop.permute.xlu0 %683
        %685 = vset.pattern.permute.xlu0 0
        %686 = vperm.xlu0 %685, %v642
        %v687 = vpop.permute.xlu0 %686
        %688 = vset.pattern.permute.xlu0 0
        %689 = vperm.xlu0 %688, %v643
        %v690 = vpop.permute.xlu0 %689
        %691 = vset.pattern.permute.xlu0 0
        %692 = vperm.xlu0 %691, %v644
        %v693 = vpop.permute.xlu0 %692
        %694 = vset.pattern.permute.xlu0 0
        %695 = vperm.xlu0 %694, %v645
        %v696 = vpop.permute.xlu0 %695
        %697 = vset.pattern.permute.xlu0 0
        %698 = vperm.xlu0 %697, %v646
        %v699 = vpop.permute.xlu0 %698
        %700 = vset.pattern.permute.xlu0 0
        %701 = vperm.xlu0 %700, %v647
        %v702 = vpop.permute.xlu0 %701
        %703 = vset.pattern.permute.xlu0 0
        %704 = vperm.xlu0 %703, %v648
        %v705 = vpop.permute.xlu0 %704
        %706 = vset.pattern.permute.xlu0 0
        %707 = vperm.xlu0 %706, %v649
        %v708 = vpop.permute.xlu0 %707
        %709 = vset.pattern.permute.xlu0 0
        %710 = vperm.xlu0 %709, %v650
        %v711 = vpop.permute.xlu0 %710
        %712 = vset.pattern.permute.xlu0 0
        %713 = vperm.xlu0 %712, %v651
        %v714 = vpop.permute.xlu0 %713
        %715 = vset.pattern.permute.xlu0 0
        %716 = vperm.xlu0 %715, %v652
        %v717 = vpop.permute.xlu0 %716
        %718 = vset.pattern.permute.xlu0 0
        %719 = vperm.xlu0 %718, %v653
        %v720 = vpop.permute.xlu0 %719
        %721 = vset.pattern.permute.xlu0 0
        %722 = vperm.xlu0 %721, %v654
        %v723 = vpop.permute.xlu0 %722
        %724 = vset.pattern.permute.xlu0 0
        %725 = vperm.xlu0 %724, %v655
        %v726 = vpop.permute.xlu0 %725
        %727 = vset.pattern.permute.xlu0 0
        %728 = vperm.xlu0 %727, %v656
        %v729 = vpop.permute.xlu0 %728
        %730 = vset.pattern.permute.xlu0 0
        %731 = vperm.xlu0 %730, %v657
        %v732 = vpop.permute.xlu0 %731
        %733 = vset.pattern.permute.xlu0 0
        %734 = vperm.xlu0 %733, %v658
        %v735 = vpop.permute.xlu0 %734
        %v736 = vlaneseq
        %v737 = vshrl.u32 %v736, 7
        %v738 = vsub.s32 0, %v737
        %v739 = vrot.slane %v660, %v738
        %vm740 = vcmp.eq.s32.totalorder %v663, %v739
        %vm741 = vcmp.eq.s32.totalorder %v666, %v739
        %vm742 = vcmp.eq.s32.totalorder %v669, %v739
        %vm743 = vcmp.eq.s32.totalorder %v672, %v739
        %vm744 = vcmp.eq.s32.totalorder %v675, %v739
        %vm745 = vcmp.eq.s32.totalorder %v678, %v739
        %vm746 = vcmp.eq.s32.totalorder %v681, %v739
        %vm747 = vcmp.eq.s32.totalorder %v684, %v739
        %vm748 = vcmp.eq.s32.totalorder %v687, %v739
        %vm749 = vcmp.eq.s32.totalorder %v690, %v739
        %vm750 = vcmp.eq.s32.totalorder %v693, %v739
        %vm751 = vcmp.eq.s32.totalorder %v696, %v739
        %vm752 = vcmp.eq.s32.totalorder %v699, %v739
        %vm753 = vcmp.eq.s32.totalorder %v702, %v739
        %vm754 = vcmp.eq.s32.totalorder %v705, %v739
        %vm755 = vcmp.eq.s32.totalorder %v708, %v739
        %vm756 = vcmp.eq.s32.totalorder %v711, %v739
        %vm757 = vcmp.eq.s32.totalorder %v714, %v739
        %vm758 = vcmp.eq.s32.totalorder %v717, %v739
        %vm759 = vcmp.eq.s32.totalorder %v720, %v739
        %vm760 = vcmp.eq.s32.totalorder %v723, %v739
        %vm761 = vcmp.eq.s32.totalorder %v726, %v739
        %vm762 = vcmp.eq.s32.totalorder %v729, %v739
        %vm763 = vcmp.eq.s32.totalorder %v732, %v739
        %vm764 = vcmp.eq.s32.totalorder %v735, %v739
        %s765 = sld [smem:[#allocation3 + %s30]]
        %p766 = scmp.ne.s32.totalorder %s765, 0
        // Predicated region
        $region41: #{tpu_custom_call.1} parent=35 // pred_check
          %p767 = pneg %p766
        $region42: #{tpu_custom_call.1} parent=35 // pred_check_branch
          %769 = sbr.rel (%p767) target = $region44
        $region43: #{tpu_custom_call.1} parent=35 // pred_region
          %s770 = scalar_lea.vmem %s4, %s30
          %v771 = vld [vmem:[%s770] sm:$0x1]
          %v773 = vlaneseq
          %v774 = vshrl.u32 %v773, 7
          %v775 = vsub.s32 0, %v774
          %v776 = vrot.slane %v771, %v775
          %v778 = vmul.f32 %v609, %v776
          %v779 = vmul.f32 %v610, %v776
          %v780 = vmul.f32 %v611, %v776
          %v781 = vmul.f32 %v612, %v776
          %v782 = vmul.f32 %v613, %v776
          %v783 = vmul.f32 %v614, %v776
          %v784 = vmul.f32 %v615, %v776
          %v785 = vmul.f32 %v616, %v776
          %v786 = vmul.f32 %v617, %v776
          %v787 = vmul.f32 %v618, %v776
          %v788 = vmul.f32 %v619, %v776
          %v789 = vmul.f32 %v620, %v776
          %v790 = vmul.f32 %v621, %v776
          %v791 = vmul.f32 %v622, %v776
          %v792 = vmul.f32 %v623, %v776
          %v793 = vmul.f32 %v624, %v776
          %v794 = vmul.f32 %v625, %v776
          %v795 = vmul.f32 %v626, %v776
          %v796 = vmul.f32 %v627, %v776
          %v797 = vmul.f32 %v628, %v776
          %v798 = vmul.f32 %v629, %v776
          %v799 = vmul.f32 %v630, %v776
          %v800 = vmul.f32 %v631, %v776
          %v801 = vmul.f32 %v632, %v776
          %v802 = vmul.f32 %v633, %v776
          %v803 = vsel %vm740, %v778, 0.0
          %v804 = vsel %vm741, %v779, 0.0
          %v805 = vsel %vm742, %v780, 0.0
          %v806 = vsel %vm743, %v781, 0.0
          %v807 = vsel %vm744, %v782, 0.0
          %v808 = vsel %vm745, %v783, 0.0
          %v809 = vsel %vm746, %v784, 0.0
          %v810 = vsel %vm747, %v785, 0.0
          %v811 = vsel %vm748, %v786, 0.0
          %v812 = vsel %vm749, %v787, 0.0
          %v813 = vsel %vm750, %v788, 0.0
          %v814 = vsel %vm751, %v789, 0.0
          %v815 = vsel %vm752, %v790, 0.0
          %v816 = vsel %vm753, %v791, 0.0
          %v817 = vsel %vm754, %v792, 0.0
          %v818 = vsel %vm755, %v793, 0.0
          %v819 = vsel %vm756, %v794, 0.0
          %v820 = vsel %vm757, %v795, 0.0
          %v821 = vsel %vm758, %v796, 0.0
          %v822 = vsel %vm759, %v797, 0.0
          %v823 = vsel %vm760, %v798, 0.0
          %v824 = vsel %vm761, %v799, 0.0
          %v825 = vsel %vm762, %v800, 0.0
          %v826 = vsel %vm763, %v801, 0.0
          %v827 = vsel %vm764, %v802, 0.0
          %vm828 = vcmask 818176
          %v829 = vsel %vm828, %v803, 0.0
          %v830 = vsel %vm828, %v804, 0.0
          %v831 = vadd.f32 %v829, %v830
          %v832 = vsel %vm828, %v805, 0.0
          %v833 = vadd.f32 %v831, %v832
          %v834 = vsel %vm828, %v806, 0.0
          %v835 = vadd.f32 %v833, %v834
          %v836 = vsel %vm828, %v807, 0.0
          %v837 = vadd.f32 %v835, %v836
          %v838 = vsel %vm828, %v808, 0.0
          %v839 = vadd.f32 %v837, %v838
          %v840 = vsel %vm828, %v809, 0.0
          %v841 = vadd.f32 %v839, %v840
          %v842 = vsel %vm828, %v810, 0.0
          %v843 = vadd.f32 %v841, %v842
          %v844 = vsel %vm828, %v811, 0.0
          %v845 = vadd.f32 %v843, %v844
          %v846 = vsel %vm828, %v812, 0.0
          %v847 = vadd.f32 %v845, %v846
          %v848 = vsel %vm828, %v813, 0.0
          %v849 = vadd.f32 %v847, %v848
          %v850 = vsel %vm828, %v814, 0.0
          %v851 = vadd.f32 %v849, %v850
          %v852 = vsel %vm828, %v815, 0.0
          %v853 = vadd.f32 %v851, %v852
          %v854 = vsel %vm828, %v816, 0.0
          %v855 = vadd.f32 %v853, %v854
          %v856 = vsel %vm828, %v817, 0.0
          %v857 = vadd.f32 %v855, %v856
          %v858 = vsel %vm828, %v818, 0.0
          %v859 = vadd.f32 %v857, %v858
          %v860 = vsel %vm828, %v819, 0.0
          %v861 = vadd.f32 %v859, %v860
          %v862 = vsel %vm828, %v820, 0.0
          %v863 = vadd.f32 %v861, %v862
          %v864 = vsel %vm828, %v821, 0.0
          %v865 = vadd.f32 %v863, %v864
          %v866 = vsel %vm828, %v822, 0.0
          %v867 = vadd.f32 %v865, %v866
          %v868 = vsel %vm828, %v823, 0.0
          %v869 = vadd.f32 %v867, %v868
          %v870 = vsel %vm828, %v824, 0.0
          %v871 = vadd.f32 %v869, %v870
          %v872 = vsel %vm828, %v825, 0.0
          %v873 = vadd.f32 %v871, %v872
          %v874 = vsel %vm828, %v826, 0.0
          %v875 = vadd.f32 %v873, %v874
          %v876 = vsel %vm828, %v827, 0.0
          %v877 = vadd.f32 %v875, %v876
          %878 = vadd.xlane.f32.xlu0 %v877
          %v879 = vpop.xlane.xlu0 %878
          %v880 = vrot.slane %v879, 4
          %v881 = vadd.f32 %v879, %v880
          %v882 = vrot.slane %v881, 2
          %v883 = vadd.f32 %v881, %v882
          %v884 = vrot.slane %v883, 1
          %v885 = vadd.f32 %v883, %v884
          %s886 = vtos %v885
          %s887 = ssub.f32 0.0, %s886
          %v888 = vstv %s887
          %889 = vst [vmem:[%s237] sm:$0x1] %v888
        $region44: #{tpu_custom_call.1} parent=35 // pred_fallthru
          _
        %p890 = scmp.eq.s32.totalorder %s765, 0
        // Predicated region
        $region45: #{tpu_custom_call.1} parent=35 // pred_check
          %p891 = pneg %p890
        $region46: #{tpu_custom_call.1} parent=35 // pred_check_branch
          %893 = sbr.rel (%p891) target = $region48
        $region47: #{tpu_custom_call.1} parent=35 // pred_region
          %v894 = vsel %vm740, %v609, 0.0
          %v895 = vsel %vm741, %v610, 0.0
          %v896 = vsel %vm742, %v611, 0.0
          %v897 = vsel %vm743, %v612, 0.0
          %v898 = vsel %vm744, %v613, 0.0
          %v899 = vsel %vm745, %v614, 0.0
          %v900 = vsel %vm746, %v615, 0.0
          %v901 = vsel %vm747, %v616, 0.0
          %v902 = vsel %vm748, %v617, 0.0
          %v903 = vsel %vm749, %v618, 0.0
          %v904 = vsel %vm750, %v619, 0.0
          %v905 = vsel %vm751, %v620, 0.0
          %v906 = vsel %vm752, %v621, 0.0
          %v907 = vsel %vm753, %v622, 0.0
          %v908 = vsel %vm754, %v623, 0.0
          %v909 = vsel %vm755, %v624, 0.0
          %v910 = vsel %vm756, %v625, 0.0
          %v911 = vsel %vm757, %v626, 0.0
          %v912 = vsel %vm758, %v627, 0.0
          %v913 = vsel %vm759, %v628, 0.0
          %v914 = vsel %vm760, %v629, 0.0
          %v915 = vsel %vm761, %v630, 0.0
          %v916 = vsel %vm762, %v631, 0.0
          %v917 = vsel %vm763, %v632, 0.0
          %v918 = vsel %vm764, %v633, 0.0
          %vm919 = vcmask 818176
          %v920 = vsel %vm919, %v894, 0.0
          %v921 = vsel %vm919, %v895, 0.0
          %v922 = vadd.f32 %v920, %v921
          %v923 = vsel %vm919, %v896, 0.0
          %v924 = vadd.f32 %v922, %v923
          %v925 = vsel %vm919, %v897, 0.0
          %v926 = vadd.f32 %v924, %v925
          %v927 = vsel %vm919, %v898, 0.0
          %v928 = vadd.f32 %v926, %v927
          %v929 = vsel %vm919, %v899, 0.0
          %v930 = vadd.f32 %v928, %v929
          %v931 = vsel %vm919, %v900, 0.0
          %v932 = vadd.f32 %v930, %v931
          %v933 = vsel %vm919, %v901, 0.0
          %v934 = vadd.f32 %v932, %v933
          %v935 = vsel %vm919, %v902, 0.0
          %v936 = vadd.f32 %v934, %v935
          %v937 = vsel %vm919, %v903, 0.0
          %v938 = vadd.f32 %v936, %v937
          %v939 = vsel %vm919, %v904, 0.0
          %v940 = vadd.f32 %v938, %v939
          %v941 = vsel %vm919, %v905, 0.0
          %v942 = vadd.f32 %v940, %v941
          %v943 = vsel %vm919, %v906, 0.0
          %v944 = vadd.f32 %v942, %v943
          %v945 = vsel %vm919, %v907, 0.0
          %v946 = vadd.f32 %v944, %v945
          %v947 = vsel %vm919, %v908, 0.0
          %v948 = vadd.f32 %v946, %v947
          %v949 = vsel %vm919, %v909, 0.0
          %v950 = vadd.f32 %v948, %v949
          %v951 = vsel %vm919, %v910, 0.0
          %v952 = vadd.f32 %v950, %v951
          %v953 = vsel %vm919, %v911, 0.0
          %v954 = vadd.f32 %v952, %v953
          %v955 = vsel %vm919, %v912, 0.0
          %v956 = vadd.f32 %v954, %v955
          %v957 = vsel %vm919, %v913, 0.0
          %v958 = vadd.f32 %v956, %v957
          %v959 = vsel %vm919, %v914, 0.0
          %v960 = vadd.f32 %v958, %v959
          %v961 = vsel %vm919, %v915, 0.0
          %v962 = vadd.f32 %v960, %v961
          %v963 = vsel %vm919, %v916, 0.0
          %v964 = vadd.f32 %v962, %v963
          %v965 = vsel %vm919, %v917, 0.0
          %v966 = vadd.f32 %v964, %v965
          %v967 = vsel %vm919, %v918, 0.0
          %v968 = vadd.f32 %v966, %v967
          %969 = vadd.xlane.f32.xlu0 %v968
          %v970 = vpop.xlane.xlu0 %969
          %v971 = vrot.slane %v970, 4
          %v972 = vadd.f32 %v970, %v971
          %v973 = vrot.slane %v972, 2
          %v974 = vadd.f32 %v972, %v973
          %v975 = vrot.slane %v974, 1
          %v976 = vadd.f32 %v974, %v975
          %s977 = vtos %v976
          %s978 = ssub.f32 0.0, %s977
          %v979 = vstv %s978
          %980 = vst [vmem:[%s237] sm:$0x1] %v979
        $region48: #{tpu_custom_call.1} parent=35 // pred_fallthru
          _
        %s981 = sand.u32 %s143, 1
        %s982 = scalar_lea.sflag [#allocation5], %s981
        %s983 = sand.u32 %s143, 1
        %s984 = scalar_lea.vmem [#allocation4], %s983
        // Predicated region
        $region49: #{tpu_custom_call.1} parent=35 // pred_check
          %p985 = pneg %p153
        $region50: #{tpu_custom_call.1} parent=35 // pred_check_branch
          %987 = sbr.rel (%p985) target = $region52
        $region51: #{tpu_custom_call.1} parent=35 // pred_region
          %s989 = ssub.s32 16, 16
          %990 = vsyncadd %s982, %s989
          %s991 = smul.addr %s29, 3
          %s992 = sadd.s32 %s30, %s991
          %s993 = smul.addr %s992, 16
          %s994 = scalar_lea.hbm %s5, %s993
          %s996 = sshll.u32 %s984, 4
          %s997 = int_to_ptr.vmem [resolvable:$true] %s996
          %999 = dma.vmem_to_hbm [thread:$0]  %s997, 16, %s994, %s982
        $region52: #{tpu_custom_call.1} parent=35 // pred_fallthru
          _
      $region36: #{tpu_custom_call.1} parent=5 // pred_fallthru
        _
      %p1000 = scmp.le.s32.totalorder 2, %s20
      // Predicated region
      $region53: #{tpu_custom_call.1} parent=5 // pred_check
        %p1001 = pneg %p1000
      $region54: #{tpu_custom_call.1} parent=5 // pred_check_branch
        %1003 = sbr.rel (%p1001) target = $region56
      $region55: #{tpu_custom_call.1} parent=5 // pred_region
        %s1004 = ssub.s32 %s20, 2
        // Predicated region
        $region57: #{tpu_custom_call.1} parent=55 // pred_check
          %p1005 = pneg %p159
        $region58: #{tpu_custom_call.1} parent=55 // pred_check_branch
          %1007 = sbr.rel (%p1005) target = $region60
        $region59: #{tpu_custom_call.1} parent=55 // pred_region
          %s1008 = sand.u32 %s144, 1
          %s1009 = scalar_lea.sflag [#allocation5], %s1008
          %s1010 = sand.u32 %s144, 1
          %s1011 = scalar_lea.vmem [#allocation4], %s1010
          %1012 = dma.done %s1009, 16
        $region60: #{tpu_custom_call.1} parent=55 // pred_fallthru
          _
      $region56: #{tpu_custom_call.1} parent=5 // pred_fallthru
        _
    $region6: #{tpu_custom_call.1} parent=1 // loop_footer
      %s24 = sadd.s32 1, %s20
    $region7: #{tpu_custom_call.1} parent=1 // loop_footer_branch
      %19 = sbr.rel target = $region3
    $region8: #{tpu_custom_call.1} parent=1 // loop_exit
      _
    %1013 = vsyncpa [#allocation5], 1
    %s1014 = scalar_lea.sflag [#allocation5], 1
    %1015 = vsyncpa %s1014, 1

</llo_original>
